<compile_context>
chip_gen: v7x
topology: tpu7x:2x2x1
jax: 0.10.0
libtpu: 0.0.40
codegen_flags: <defaults>
</compile_context>

<pallas_src>
import math
import functools

import jax
import jax.numpy as jnp
from jax.experimental import pallas as pl
from jax.experimental.pallas import tpu as pltpu


# ----------------------------- kernels --------------------------------------

def _posenc_add_kernel(x_ref, pe_ref, o_ref):
    """o = x + pe (pe broadcast over the batch rows of the tile)."""
    o_ref[...] = x_ref[...] + pe_ref[...]


def _posenc_dropout_kernel(x_ref, pe_ref, bits_ref, o_ref, *, p):
    """o = dropout(x + pe, p) with inverted scaling, integer-threshold mask."""
    y = x_ref[...] + pe_ref[...]
    thresh = jnp.uint32(min(int(p * 4294967296.0), 4294967295))
    keep = bits_ref[...] >= thresh
    scale = jnp.asarray(1.0 / (1.0 - p), dtype=y.dtype)
    o_ref[...] = (y * jnp.where(keep, scale, jnp.zeros_like(scale))).astype(o_ref.dtype)


# ----------------------------- tiling helpers --------------------------------

_LANE = 128
_TC_CAP = 64 * 1024          # max elements along the lane axis per tile
_TILE_BYTES = 2 << 20        # ~2 MiB target per x tile


def _choose_lane_tile(n):
    """Largest multiple of 128 dividing n and <= _TC_CAP; else the full extent."""
    if n <= _TC_CAP:
        return n
    if n % _LANE != 0:
        return n   # full extent keeps the BlockSpec legal (rare shape)
    best = _LANE
    t = _LANE
    while t <= _TC_CAP:
        if n % t == 0:
            best = t
        t += _LANE
    return best


def _choose_batch_tile(b, tc, itemsize):
    """Batch rows per tile: full batch if it fits, else a multiple of 8."""
    max_tb = max(1, _TILE_BYTES // max(1, tc * itemsize))
    if b <= max_tb:
        return b
    return max(8, (max_tb // 8) * 8)


# ----------------------------- module-equivalent API -------------------------

def make_pe(d_model, max_len=500, dtype=jnp.float32):
    """Positional-encoding table identical to the PyTorch __init__ (squeezed to [max_len, D])."""
    position = jnp.arange(max_len, dtype=jnp.float32)[:, None]               # [max_len, 1]
    div_term = jnp.exp(jnp.arange(0, d_model, 2, dtype=jnp.float32)
                       * (-math.log(10000.0) / d_model))                     # [d_model/2]
    pe = jnp.zeros((max_len, d_model), dtype=jnp.float32)
    pe = pe.at[:, 0::2].set(jnp.sin(position * div_term))
    pe = pe.at[:, 1::2].set(jnp.cos(position * div_term))
    return pe.astype(dtype)


def positional_encoding(x, pe, *, p=0.1, training=True, key=None):
    """x: [B, S, D]; pe: [max_len, D]. Returns dropout(x + pe[:S], p)."""
    B, S, D = x.shape
    if S > pe.shape[0]:
        raise ValueError(f"sequence length {S} exceeds max_len {pe.shape[0]}")

    N = S * D
    x2 = x.reshape(B, N)
    pe2 = pe[:S].astype(x.dtype).reshape(1, N)   # pre-cast once, lane-dense layout

    TC = _choose_lane_tile(N)
    TB = _choose_batch_tile(B, TC, jnp.dtype(x.dtype).itemsize)
    n_blocks = pl.cdiv(N, TC)
    b_blocks = pl.cdiv(B, TB)

    # grid = (lane-tile axis, batch axis); batch innermost -> pe tile reused.
    x_spec = pl.BlockSpec((TB, TC), lambda j, i: (i, j))
    pe_spec = pl.BlockSpec((1, TC), lambda j, i: (0, j))
    out_spec = pl.BlockSpec((TB, TC), lambda j, i: (i, j))

    compiler_params = pltpu.CompilerParams(
        dimension_semantics=("parallel", "parallel"),
        vmem_limit_bytes=32 * 1024 * 1024,
    )

    use_dropout = bool(training) and float(p) > 0.0

    if use_dropout:
        if key is None:
            key = jax.random.PRNGKey(0)
        bits = jax.random.bits(key, (B, N), dtype=jnp.uint32)
        kernel = functools.partial(_posenc_dropout_kernel, p=float(p))
        out2 = pl.pallas_call(
            kernel,
            out_shape=jax.ShapeDtypeStruct((B, N), x.dtype),
            grid=(n_blocks, b_blocks),
            in_specs=[x_spec, pe_spec, x_spec],   # bits tiled exactly like x
            out_specs=out_spec,
            compiler_params=compiler_params,
        )(x2, pe2, bits)
    else:
        out2 = pl.pallas_call(
            _posenc_add_kernel,
            out_shape=jax.ShapeDtypeStruct((B, N), x.dtype),
            grid=(n_blocks, b_blocks),
            in_specs=[x_spec, pe_spec],
            out_specs=out_spec,
            compiler_params=compiler_params,
        )(x2, pe2)

    return out2.reshape(B, S, D)


# ----------------------------- demo / self-check ------------------------------

if __name__ == "__main__":
    B, S, D = 2, 8, 32
    max_len = 500
    p = 0.1

    key = jax.random.PRNGKey(0)
    kx, kd = jax.random.split(key)
    x = jax.random.normal(kx, (B, S, D), dtype=jnp.float32)
    pe = make_pe(D, max_len=max_len)

    # Eval mode (dropout disabled): deterministic, compare against pure-JAX reference.
    out_eval = jax.block_until_ready(positional_encoding(x, pe, p=p, training=False))
    ref = x + pe[:S][None, :, :]
    assert out_eval.shape == (B, S, D)
    assert jnp.allclose(out_eval, ref, atol=1e-5, rtol=1e-5), "eval-mode mismatch"

    # Train mode (dropout active): every element is either 0 or (x+pe)/(1-p).
    out_train = jax.block_until_ready(
        positional_encoding(x, pe, p=p, training=True, key=kd))
    assert out_train.shape == (B, S, D)
    scaled = ref / (1.0 - p)
    ok = (jnp.isclose(out_train, 0.0, atol=1e-6)
          | jnp.isclose(out_train, scaled, atol=1e-5, rtol=1e-5))
    assert bool(jnp.all(ok)), "train-mode dropout values not in {0, scaled}"

    print("KERNEL_OK")
</pallas_src>

<mosaic_0001>
module attributes {stable_mosaic.version = 11 : i64} {
  func.func @_posenc_add_kernel(%arg0: i32, %arg1: i32, %arg2: memref<2x256xf32, #tpu.memory_space<vmem>>, %arg3: memref<1x256xf32, #tpu.memory_space<vmem>>, %arg4: memref<2x256xf32, #tpu.memory_space<vmem>>) attributes {dimension_semantics = [#tpu.dimension_semantics<parallel>, #tpu.dimension_semantics<parallel>], iteration_bounds = array<i64: 1, 1>, scalar_prefetch = 0 : i64, scratch_operands = 0 : i64, tpu.core_type = #tpu.core_type<tc>, window_params = [{transform_indices = @transform_0, window_bounds = array<i64: 2, 256>}, {transform_indices = @transform_1, window_bounds = array<i64: 1, 256>}, {transform_indices = @transform_2, window_bounds = array<i64: 2, 256>}]} {
    %c0 = arith.constant 0 : index
    %c0_0 = arith.constant 0 : index
    %0 = vector.load %arg2[%c0, %c0_0] : memref<2x256xf32, #tpu.memory_space<vmem>>, vector<2x256xf32>
    %c0_1 = arith.constant 0 : index
    %c0_2 = arith.constant 0 : index
    %1 = vector.load %arg3[%c0_1, %c0_2] : memref<1x256xf32, #tpu.memory_space<vmem>>, vector<1x256xf32>
    %2 = vector.broadcast %1 : vector<1x256xf32> to vector<2x256xf32>
    %3 = arith.addf %0, %2 : vector<2x256xf32>
    %c0_3 = arith.constant 0 : index
    %c0_4 = arith.constant 0 : index
    %4 = vector.load %arg4[%c0_3, %c0_4] : memref<2x256xf32, #tpu.memory_space<vmem>>, vector<2x256xf32>
    tpu.vector_store %arg4[%c0_3, %c0_4], %3 {strides = array<i32>} : memref<2x256xf32, #tpu.memory_space<vmem>>, vector<2x256xf32>,
    return
  }
  func.func @transform_0(%arg0: i32, %arg1: i32) -> (i32, i32) {
    %c0_i32 = arith.constant 0 : i32
    return %arg1, %arg0 : i32, i32
  }
  func.func @transform_1(%arg0: i32, %arg1: i32) -> (i32, i32) {
    %c0_i32 = arith.constant 0 : i32
    %c0_i32_0 = arith.constant 0 : i32
    return %c0_i32, %arg0 : i32, i32
  }
  func.func @transform_2(%arg0: i32, %arg1: i32) -> (i32, i32) {
    %c0_i32 = arith.constant 0 : i32
    return %arg1, %arg0 : i32, i32
  }
}

</mosaic_0001>

<llo_original>
// kernel: tpu_custom_call.1
$region0: #{tpu_custom_call.1}
  #allocation0 [shape = 'u32[]', space=smem, size = 0x4, offset = 0x4, fixed_abs, tag = 'smem constant byte address 0x4 - core index']
  #allocation1 [shape = 'u32[144,128]{1,0:T(1,128)}', space=vmem, size = 0x12000, scoped, tag = 'internal scratch']
  %s0 = inlined_call_operand.hbm [shape: f32[2,256], index: 0, kind: input, shape index: {}]
  %s1 = inlined_call_operand.vmem [shape: f32[1,256], index: 1, kind: input, shape index: {}]
  %s2 = inlined_call_operand.hbm [shape: f32[2,256], index: 2, kind: output, shape index: {}]
  %s3 = sld [smem:[#allocation0]]
  $region22: #{tpu_custom_call.1} parent=0
    _
  %s5 = ssub.s32 1, %s3
  %s6 = scalar_select 0, %s5, %s3
  $region1: #{tpu_custom_call.1} parent=0
    #allocation2 [shape = 'u8[2048]{0}', space=vmem, size = 0x800, scoped, tag = 'input window, operand 0, single buffered']
    #allocation3 [shape = 's32[1]{0}', space=sflag, size = 0x4, scoped, tag = 'scoped memory for tpu_custom_call.1']
    #allocation4 [shape = 's32[1]{0}', space=sflag, size = 0x4, scoped, tag = 'scoped memory for tpu_custom_call.1']
    #allocation5 [shape = 'u8[2048]{0}', space=vmem, size = 0x800, scoped, tag = 'output window, operand 0, single buffered']
    %7 = vsyncpa [#allocation3], 0
    %8 = vsyncpa [#allocation4], 0
    // Predicated region
    $region2: #{tpu_custom_call.1} parent=1 // pred_check
      _
    $region3: #{tpu_custom_call.1} parent=1 // pred_check_branch
      %10 = sbr.rel (0) target = $region5
    $region4: #{tpu_custom_call.1} parent=1 // pred_region
      %s12 = ssub.s32 64, 64
      %13 = vsyncadd [#allocation3], %s12
      %s15 = sshll.u32 [#allocation2], 4
      %s16 = int_to_ptr.vmem [resolvable:$true] %s15
      %18 = dma.hbm_to_vmem [thread:$0]  %s0, 64, %s16, [#allocation3]
    $region5: #{tpu_custom_call.1} parent=1 // pred_fallthru
      _
    // Predicated region
    $region6: #{tpu_custom_call.1} parent=1 // pred_check
      _
    $region7: #{tpu_custom_call.1} parent=1 // pred_check_branch
      %20 = sbr.rel (0) target = $region9
    $region8: #{tpu_custom_call.1} parent=1 // pred_region
      _
    $region9: #{tpu_custom_call.1} parent=1 // pred_fallthru
      _
    // Predicated region
    $region10: #{tpu_custom_call.1} parent=1 // pred_check
      _
    $region11: #{tpu_custom_call.1} parent=1 // pred_check_branch
      %22 = sbr.rel (0) target = $region13
    $region12: #{tpu_custom_call.1} parent=1 // pred_region
      %23 = dma.done [#allocation3], 64
    $region13: #{tpu_custom_call.1} parent=1 // pred_fallthru
      _
    %v24 = vld [vmem:[#allocation2] sm:$0xf]
    %v25 = vld [vmem:[%s1] sm:$0x3]
    %v27 = vlaneseq
    %v28 = vshrl.u32 %v27, 7
    %v29 = vsub.s32 0, %v28
    %v30 = vrot.slane %v25, %v29
    %v31 = vlaneseq
    %v32 = vshrl.u32 %v31, 7
    %v33 = vsub.s32 1, %v32
    %v34 = vrot.slane %v25, %v33
    %v35 = vcombine.low %v30, %v34
    %v37 = vunpack.c.l.s4 1983009808
    %v38 = vunpack.c.0.s8 %v37
    %v39 = vlaneseq
    %v40 = vshrl.u32 %v39, 7
    %v41 = vsub.s32 %v38, %v40
    %v42 = vrot.slane %v35, %v41
    %v44 = vadd.f32 %v24, %v42
    %45 = vst [vmem:[#allocation5] sm:$0xf] %v44
    // Predicated region
    $region14: #{tpu_custom_call.1} parent=1 // pred_check
      _
    $region15: #{tpu_custom_call.1} parent=1 // pred_check_branch
      %47 = sbr.rel (0) target = $region17
    $region16: #{tpu_custom_call.1} parent=1 // pred_region
      %s49 = ssub.s32 64, 64
      %50 = vsyncadd [#allocation4], %s49
      %s52 = sshll.u32 [#allocation5], 4
      %s53 = int_to_ptr.vmem [resolvable:$true] %s52
      %55 = dma.vmem_to_hbm [thread:$0]  %s53, 64, %s2, [#allocation4]
    $region17: #{tpu_custom_call.1} parent=1 // pred_fallthru
      _
    // Predicated region
    $region18: #{tpu_custom_call.1} parent=1 // pred_check
      _
    $region19: #{tpu_custom_call.1} parent=1 // pred_check_branch
      %57 = sbr.rel (0) target = $region21
    $region20: #{tpu_custom_call.1} parent=1 // pred_region
      %58 = dma.done [#allocation4], 64
    $region21: #{tpu_custom_call.1} parent=1 // pred_fallthru
      _
    %59 = vsyncpa [#allocation3], 1
    %60 = vsyncpa [#allocation4], 1

</llo_original>
